<compile_context>
chip_gen: v7x
topology: tpu7x:2x2x1
jax: 0.10.0
libtpu: 0.0.40
codegen_flags: <defaults>
</compile_context>

<pallas_src>
import jax
import jax.numpy as jnp
import numpy as np
from jax.experimental import pallas as pl
from jax.experimental.pallas import tpu as pltpu


def _xpos_kernel(x_ref, cos_ref, sin_odd_ref, sin_even_ref, o_ref):
    # All refs are (TS, L): the batch dim of x/o is squeezed by the BlockSpec.
    x = x_ref[...]
    lanes = x.shape[-1]
    # rotate_every_two expressed with two lane rotations (XLU). The even/odd
    # parity selection, sign, and wrap-around masking are folded into the
    # precomputed tables:
    #   right[j] = x[j-1]  -> used on odd lanes,  table holds +sin there
    #   left[j]  = x[j+1]  -> used on even lanes, table holds -sin there
    right = pltpu.roll(x, shift=1, axis=1)
    left = pltpu.roll(x, shift=lanes - 1, axis=1)
    o_ref[...] = (x * cos_ref[...]
                  + right * sin_odd_ref[...]
                  + left * sin_even_ref[...])


def _choose_row_tile(rows, lanes, itemsize):
    """Largest multiple-of-8 row tile giving ~1 MiB per x block.

    About 10 buffers of this size are live at once (x/out + 3 tables, each
    double-buffered), which keeps total VMEM ~10 MiB for f32 -- safe on the
    16 MiB scoped-VMEM default of v5e and comfortable on v6e/v7x.
    """
    target = max(8, (1 << 20) // max(1, lanes * itemsize))
    if rows <= target:
        return rows
    return max(8, (target // 8) * 8)


def xpos_apply(x, sin_d, cos_d):
    """x: (B, S, D); sin_d/cos_d: (S, D) duplicate-interleaved sin/cos*scale."""
    B, S, D = x.shape
    if D % 2 != 0:
        # TODO(synk): odd head_dim (torch pads inside rotate_every_two) is not
        # supported by this kernel.
        raise ValueError("head_dim must be even")
    dt = x.dtype
    itemsize = jnp.dtype(dt).itemsize

    # Fold the parity select + sign of rotate_every_two into the tables.
    parity = jnp.arange(D, dtype=jnp.int32) % 2            # 0 even, 1 odd
    cos_t = cos_d.astype(dt)
    sin_odd = jnp.where(parity == 1, sin_d, 0.0).astype(dt)
    sin_even_neg = jnp.where(parity == 0, -sin_d, 0.0).astype(dt)

    # Lane-density fold: pack k consecutive sequence positions per row so the
    # trailing dim reaches 128 lanes. Even/odd pairs remain adjacent; parity of
    # a folded lane equals the parity of the original d because D is even.
    k = 1
    while k * D < 128 and S % (2 * k) == 0:
        k *= 2
    rows, lanes = S // k, k * D
    xf = x.reshape(B, rows, lanes)
    cos_t = cos_t.reshape(rows, lanes)
    sin_odd = sin_odd.reshape(rows, lanes)
    sin_even_neg = sin_even_neg.reshape(rows, lanes)

    ts = _choose_row_tile(rows, lanes, itemsize)
    num_s = pl.cdiv(rows, ts)

    cost = pl.CostEstimate(
        flops=5 * B * S * D,
        transcendentals=0,
        bytes_accessed=(2 * B + 3) * S * D * itemsize,
    )

    out = pl.pallas_call(
        _xpos_kernel,
        out_shape=jax.ShapeDtypeStruct((B, rows, lanes), dt),
        grid_spec=pltpu.PrefetchScalarGridSpec(
            num_scalar_prefetch=0,
            # S tiles outer, batch inner: table block indices are constant
            # across the inner B loop, so the tables stay VMEM-resident.
            grid=(num_s, B),
            in_specs=[
                pl.BlockSpec((pl.Squeezed(), ts, lanes),
                             lambda s, b: (b, s, 0)),
                pl.BlockSpec((ts, lanes), lambda s, b: (s, 0)),
                pl.BlockSpec((ts, lanes), lambda s, b: (s, 0)),
                pl.BlockSpec((ts, lanes), lambda s, b: (s, 0)),
            ],
            out_specs=pl.BlockSpec((pl.Squeezed(), ts, lanes),
                                   lambda s, b: (b, s, 0)),
        ),
        compiler_params=pltpu.CompilerParams(
            dimension_semantics=("parallel", "parallel")),
        cost_estimate=cost,
    )(xf, cos_t, sin_odd, sin_even_neg)
    return out.reshape(B, S, D)


class XPOS:
    """JAX/Pallas port of the PyTorch XPOS module (forward / forward_reverse)."""

    def __init__(self, head_dim, scale_base=512):
        self.head_dim = head_dim
        self.scale_base = scale_base
        # Deterministic buffer from __init__:
        # (arange(0, head_dim, 2) + 0.4*head_dim) / (1.4*head_dim)
        self.scale = (jnp.arange(0, head_dim, 2, dtype=jnp.float32)
                      + 0.4 * head_dim) / (1.4 * head_dim)

    def _tables(self, length, offset, downscale, min_pos=0):
        max_pos = length + offset + min_pos
        pos = jnp.arange(min_pos, max_pos, dtype=jnp.float32)
        # (N, head_dim//2)
        scale = self.scale[None, :] ** (pos / self.scale_base)[:, None]

        # fixed_pos_embedding(scale)
        seq_len, dim = scale.shape
        inv_freq = 1.0 / (10000.0 ** (jnp.arange(0, dim, dtype=jnp.float32) / dim))
        sinusoid = (jnp.arange(0, seq_len, dtype=jnp.float32)[:, None]
                    * inv_freq[None, :])
        sin = jnp.sin(sinusoid)
        cos = jnp.cos(sinusoid)

        if seq_len > length:
            scale = scale[-length:]
            sin = sin[-length:]
            cos = cos[-length:]
        if downscale:
            scale = 1.0 / scale

        # duplicate_interleave(t * scale): (S, D/2) -> (S, D) = [a0,a0,a1,a1,...]
        sin_d = jnp.repeat(sin * scale, 2, axis=-1)
        cos_d = jnp.repeat(cos * scale, 2, axis=-1)
        return sin_d, cos_d

    def forward(self, x, offset=0, downscale=False):
        _, length, _ = x.shape
        sin_d, cos_d = self._tables(length, offset, downscale, min_pos=0)
        return xpos_apply(x, sin_d, cos_d)

    def forward_reverse(self, x, offset=0, downscale=False):
        _, length, _ = x.shape
        min_pos = -(length + offset) // 2
        sin_d, cos_d = self._tables(length, offset, downscale, min_pos=min_pos)
        return xpos_apply(x, -sin_d, cos_d)


def _xpos_reference(x, sin_d, cos_d):
    """Pure-JAX reference mirroring the PyTorch apply_rotary_pos_emb."""
    x1 = x[:, :, 0::2]
    x2 = x[:, :, 1::2]
    rot = jnp.stack((-x2, x1), axis=-1).reshape(x.shape)
    return x * cos_d + rot * sin_d


if __name__ == "__main__":
    B, S, D = 2, 8, 32  # batch, sequence_length, head_dim (even)
    key = jax.random.PRNGKey(0)
    x = jax.random.normal(key, (B, S, D), dtype=jnp.float32)

    xpos = XPOS(head_dim=D, scale_base=512)

    # forward
    out = jax.block_until_ready(xpos.forward(x, offset=0, downscale=False))
    sin_d, cos_d = xpos._tables(S, 0, False, min_pos=0)
    ref = _xpos_reference(x, sin_d, cos_d)
    np.testing.assert_allclose(np.asarray(out), np.asarray(ref),
                               rtol=1e-5, atol=1e-5)

    # forward_reverse (negated sin, shifted positions, downscale)
    out_r = jax.block_until_ready(xpos.forward_reverse(x, offset=0,
                                                       downscale=True))
    min_pos = -(S + 0) // 2
    sin_r, cos_r = xpos._tables(S, 0, True, min_pos=min_pos)
    ref_r = _xpos_reference(x, -sin_r, cos_r)
    np.testing.assert_allclose(np.asarray(out_r), np.asarray(ref_r),
                               rtol=1e-5, atol=1e-5)

    print("KERNEL_OK")
</pallas_src>

<mosaic_0001>
module attributes {stable_mosaic.version = 11 : i64} {
  func.func @_xpos_kernel(%arg0: i32, %arg1: i32, %arg2: memref<1x2x128xf32, #tpu.memory_space<vmem>>, %arg3: memref<2x128xf32, #tpu.memory_space<vmem>>, %arg4: memref<2x128xf32, #tpu.memory_space<vmem>>, %arg5: memref<2x128xf32, #tpu.memory_space<vmem>>, %arg6: memref<1x2x128xf32, #tpu.memory_space<vmem>>) attributes {dimension_semantics = [#tpu.dimension_semantics<parallel>, #tpu.dimension_semantics<parallel>], iteration_bounds = array<i64: 1, 2>, scalar_prefetch = 0 : i64, scratch_operands = 0 : i64, tpu.core_type = #tpu.core_type<tc>, window_params = [{transform_indices = @transform_0, window_bounds = array<i64: 1, 2, 128>}, {transform_indices = @transform_1, window_bounds = array<i64: 2, 128>}, {transform_indices = @transform_2, window_bounds = array<i64: 2, 128>}, {transform_indices = @transform_3, window_bounds = array<i64: 2, 128>}, {transform_indices = @transform_4, window_bounds = array<i64: 1, 2, 128>}]} {
    %c0 = arith.constant 0 : index
    %c0_0 = arith.constant 0 : index
    %c0_1 = arith.constant 0 : index
    %0 = vector.load %arg2[%c0, %c0_0, %c0_1] : memref<1x2x128xf32, #tpu.memory_space<vmem>>, vector<1x2x128xf32>
    %1 = vector.shape_cast %0 : vector<1x2x128xf32> to vector<2x128xf32>
    %c1_i32 = arith.constant 1 : i32
    %2 = tpu.dynamic_rotate %1 by %c1_i32 dim 1 : vector<2x128xf32>, i32 -> vector<2x128xf32>
    %c127_i32 = arith.constant 127 : i32
    %3 = tpu.dynamic_rotate %1 by %c127_i32 dim 1 : vector<2x128xf32>, i32 -> vector<2x128xf32>
    %c0_2 = arith.constant 0 : index
    %c0_3 = arith.constant 0 : index
    %4 = vector.load %arg3[%c0_2, %c0_3] : memref<2x128xf32, #tpu.memory_space<vmem>>, vector<2x128xf32>
    %5 = arith.mulf %1, %4 : vector<2x128xf32>
    %c0_4 = arith.constant 0 : index
    %c0_5 = arith.constant 0 : index
    %6 = vector.load %arg4[%c0_4, %c0_5] : memref<2x128xf32, #tpu.memory_space<vmem>>, vector<2x128xf32>
    %7 = arith.mulf %2, %6 : vector<2x128xf32>
    %8 = arith.addf %5, %7 : vector<2x128xf32>
    %c0_6 = arith.constant 0 : index
    %c0_7 = arith.constant 0 : index
    %9 = vector.load %arg5[%c0_6, %c0_7] : memref<2x128xf32, #tpu.memory_space<vmem>>, vector<2x128xf32>
    %10 = arith.mulf %3, %9 : vector<2x128xf32>
    %11 = arith.addf %8, %10 : vector<2x128xf32>
    %c0_8 = arith.constant 0 : index
    %c0_9 = arith.constant 0 : index
    %c0_10 = arith.constant 0 : index
    %12 = vector.load %arg6[%c0_8, %c0_9, %c0_10] : memref<1x2x128xf32, #tpu.memory_space<vmem>>, vector<1x2x128xf32>
    %13 = vector.shape_cast %12 : vector<1x2x128xf32> to vector<2x128xf32>
    %14 = vector.shape_cast %11 : vector<2x128xf32> to vector<1x2x128xf32>
    tpu.vector_store %arg6[%c0_8, %c0_9, %c0_10], %14 {strides = array<i32>} : memref<1x2x128xf32, #tpu.memory_space<vmem>>, vector<1x2x128xf32>,
    return
  }
  func.func @transform_0(%arg0: i32, %arg1: i32) -> (i32, i32, i32) {
    %c0_i32 = arith.constant 0 : i32
    %c0_i32_0 = arith.constant 0 : i32
    return %arg1, %arg0, %c0_i32 : i32, i32, i32
  }
  func.func @transform_1(%arg0: i32, %arg1: i32) -> (i32, i32) {
    %c0_i32 = arith.constant 0 : i32
    %c0_i32_0 = arith.constant 0 : i32
    return %arg0, %c0_i32 : i32, i32
  }
  func.func @transform_2(%arg0: i32, %arg1: i32) -> (i32, i32) {
    %c0_i32 = arith.constant 0 : i32
    %c0_i32_0 = arith.constant 0 : i32
    return %arg0, %c0_i32 : i32, i32
  }
  func.func @transform_3(%arg0: i32, %arg1: i32) -> (i32, i32) {
    %c0_i32 = arith.constant 0 : i32
    %c0_i32_0 = arith.constant 0 : i32
    return %arg0, %c0_i32 : i32, i32
  }
  func.func @transform_4(%arg0: i32, %arg1: i32) -> (i32, i32, i32) {
    %c0_i32 = arith.constant 0 : i32
    %c0_i32_0 = arith.constant 0 : i32
    return %arg1, %arg0, %c0_i32 : i32, i32, i32
  }
}

</mosaic_0001>

<llo_original>
// kernel: tpu_custom_call.1
$region0: #{tpu_custom_call.1}
  #allocation0 [shape = 'u32[]', space=smem, size = 0x4, offset = 0x4, fixed_abs, tag = 'smem constant byte address 0x4 - core index']
  #allocation1 [shape = 'u32[144,128]{1,0:T(1,128)}', space=vmem, size = 0x12000, scoped, tag = 'internal scratch']
  %s0 = inlined_call_operand.hbm [shape: f32[2,2,128], index: 0, kind: input, shape index: {}]
  %s1 = inlined_call_operand.vmem [shape: f32[2,128], index: 1, kind: input, shape index: {}]
  %s2 = inlined_call_operand.vmem [shape: f32[2,128], index: 2, kind: input, shape index: {}]
  %s3 = inlined_call_operand.vmem [shape: f32[2,128], index: 3, kind: input, shape index: {}]
  %s4 = inlined_call_operand.hbm [shape: f32[2,2,128], index: 4, kind: output, shape index: {}]
  %s5 = sld [smem:[#allocation0]]
  $region53: #{tpu_custom_call.1} parent=0
    _
  %s7 = ssub.s32 1, %s5
  %s8 = scalar_select 0, %s7, %s5
  $region1: #{tpu_custom_call.1} parent=0
    #allocation2 [shape = 'u8[2048]{0}', space=vmem, size = 0x800, scoped, tag = 'input window, operand 0']
    #allocation3 [shape = 's32[2]{0}', space=sflag, size = 0x8, scoped, tag = 'scoped memory for tpu_custom_call.1']
    #allocation4 [shape = 's32[2]{0}', space=sflag, size = 0x8, scoped, tag = 'scoped memory for tpu_custom_call.1']
    #allocation5 [shape = 'u8[2048]{0}', space=vmem, size = 0x800, scoped, tag = 'output window, operand 0']
    %9 = vsyncpa [#allocation3], 0
    %s10 = scalar_lea.sflag [#allocation3], 1
    %11 = vsyncpa %s10, 0
    %12 = vsyncpa [#allocation4], 0
    %s13 = scalar_lea.sflag [#allocation4], 1
    %14 = vsyncpa %s13, 0
    loop: start=0, step=1, limit=4
    $region2: #{tpu_custom_call.1} parent=1 // loop_pre_header
      _
    $region3: #{tpu_custom_call.1} parent=1 // loop_header
      %s16 = sphi 0, %s20
      %p17 = scmp.ge.s32.totalorder %s16, 4
      %s23 = sphi 0, %s35
      %s24 = sphi 0, %s31
      %s25 = sphi 0, %s23
      %s26 = sphi 0, %s24
      %s27 = sphi 0, %s25
      %s28 = sphi 0, %s26
      %s40 = sphi 0, %s42
      %s43 = sphi 0, %s40
      %s44 = sphi 0, %s43
      %s60 = sphi 0, %s44
      %s66 = sphi 0, %s68
      %s69 = sphi 0, %s66
      %s70 = sphi 0, %s69
      %s86 = sphi 0, %s70
      %s92 = sphi 0, %s94
      %s95 = sphi 0, %s92
      %s96 = sphi 0, %s95
      %s112 = sphi 0, %s96
      %s118 = sphi 0, %s120
      %s121 = sphi 0, %s118
      %s122 = sphi 0, %s121
      %s138 = sphi 0, %s122
      %s146 = sphi 0, %s148
      %s149 = sphi 0, %s146
      %s150 = sphi 0, %s149
      %s166 = sphi 0, %s150
    $region4: #{tpu_custom_call.1} parent=1 // loop_header_branch
      %19 = sbr.rel (%p17) target = $region8
    $region5: #{tpu_custom_call.1} parent=1 // loop_body
      %s21 = ssub.s32 %s16, 1
      %s22 = ssub.s32 %s16, 2
      %s29 = sadd.s32 1, %s24
      %p30 = scmp.ge.s32.totalorder %s29, 2
      %s31 = scalar_select %p30, 0, %s29
      %s32 = sadd.s32 1, %s23
      %s33 = scalar_select %p30, %s32, %s23
      %p34 = scmp.ge.s32.totalorder %s33, 1
      %s35 = scalar_select %p34, 0, %s33
      %s36 = ssub.s32 %s24, %s31
      %s37 = ssub.s32 %s23, %s35
      %s38 = sor.u32 %s36, %s37
      %p39 = scmp.eq.s32.totalorder %s38, 0
      %s41 = sadd.s32 %s40, 1
      %s42 = scalar_select %p39, %s40, %s41
      %p45 = pneg %p39
      %p46 = scmp.eq.s32.totalorder %s16, 1
      %p47 = por %p45, %p46
      %p48 = scmp.ne.s32.totalorder %s40, %s43
      %p49 = scmp.eq.s32.totalorder %s16, 0
      %p50 = por %p48, %p49
      %p51 = scmp.ne.s32.totalorder %s40, %s43
      %p52 = scmp.eq.s32.totalorder %s21, 1
      %p53 = por %p51, %p52
      %p54 = scmp.ne.s32.totalorder %s43, %s44
      %p55 = scmp.eq.s32.totalorder %s21, 0
      %p56 = por %p54, %p55
      %p57 = scmp.ne.s32.totalorder %s43, %s44
      %p58 = scmp.eq.s32.totalorder %s22, 1
      %p59 = por %p57, %p58
      %p61 = scmp.ne.s32.totalorder %s44, %s60
      %p62 = scmp.eq.s32.totalorder %s22, 0
      %p63 = por %p61, %p62
      %s64 = ssub.s32 %s23, %s35
      %p65 = scmp.eq.s32.totalorder %s64, 0
      %s67 = sadd.s32 %s66, 1
      %s68 = scalar_select %p65, %s66, %s67
      %p71 = pneg %p65
      %p72 = scmp.eq.s32.totalorder %s16, 1
      %p73 = por %p71, %p72
      %p74 = scmp.ne.s32.totalorder %s66, %s69
      %p75 = scmp.eq.s32.totalorder %s16, 0
      %p76 = por %p74, %p75
      %p77 = scmp.ne.s32.totalorder %s66, %s69
      %p78 = scmp.eq.s32.totalorder %s21, 1
      %p79 = por %p77, %p78
      %p80 = scmp.ne.s32.totalorder %s69, %s70
      %p81 = scmp.eq.s32.totalorder %s21, 0
      %p82 = por %p80, %p81
      %p83 = scmp.ne.s32.totalorder %s69, %s70
      %p84 = scmp.eq.s32.totalorder %s22, 1
      %p85 = por %p83, %p84
      %p87 = scmp.ne.s32.totalorder %s70, %s86
      %p88 = scmp.eq.s32.totalorder %s22, 0
      %p89 = por %p87, %p88
      %s90 = ssub.s32 %s23, %s35
      %p91 = scmp.eq.s32.totalorder %s90, 0
      %s93 = sadd.s32 %s92, 1
      %s94 = scalar_select %p91, %s92, %s93
      %p97 = pneg %p91
      %p98 = scmp.eq.s32.totalorder %s16, 1
      %p99 = por %p97, %p98
      %p100 = scmp.ne.s32.totalorder %s92, %s95
      %p101 = scmp.eq.s32.totalorder %s16, 0
      %p102 = por %p100, %p101
      %p103 = scmp.ne.s32.totalorder %s92, %s95
      %p104 = scmp.eq.s32.totalorder %s21, 1
      %p105 = por %p103, %p104
      %p106 = scmp.ne.s32.totalorder %s95, %s96
      %p107 = scmp.eq.s32.totalorder %s21, 0
      %p108 = por %p106, %p107
      %p109 = scmp.ne.s32.totalorder %s95, %s96
      %p110 = scmp.eq.s32.totalorder %s22, 1
      %p111 = por %p109, %p110
      %p113 = scmp.ne.s32.totalorder %s96, %s112
      %p114 = scmp.eq.s32.totalorder %s22, 0
      %p115 = por %p113, %p114
      %s116 = ssub.s32 %s23, %s35
      %p117 = scmp.eq.s32.totalorder %s116, 0
      %s119 = sadd.s32 %s118, 1
      %s120 = scalar_select %p117, %s118, %s119
      %p123 = pneg %p117
      %p124 = scmp.eq.s32.totalorder %s16, 1
      %p125 = por %p123, %p124
      %p126 = scmp.ne.s32.totalorder %s118, %s121
      %p127 = scmp.eq.s32.totalorder %s16, 0
      %p128 = por %p126, %p127
      %p129 = scmp.ne.s32.totalorder %s118, %s121
      %p130 = scmp.eq.s32.totalorder %s21, 1
      %p131 = por %p129, %p130
      %p132 = scmp.ne.s32.totalorder %s121, %s122
      %p133 = scmp.eq.s32.totalorder %s21, 0
      %p134 = por %p132, %p133
      %p135 = scmp.ne.s32.totalorder %s121, %s122
      %p136 = scmp.eq.s32.totalorder %s22, 1
      %p137 = por %p135, %p136
      %p139 = scmp.ne.s32.totalorder %s122, %s138
      %p140 = scmp.eq.s32.totalorder %s22, 0
      %p141 = por %p139, %p140
      %s142 = ssub.s32 %s24, %s31
      %s143 = ssub.s32 %s23, %s35
      %s144 = sor.u32 %s142, %s143
      %p145 = scmp.eq.s32.totalorder %s144, 0
      %s147 = sadd.s32 %s146, 1
      %s148 = scalar_select %p145, %s146, %s147
      %p151 = pneg %p145
      %p152 = scmp.eq.s32.totalorder %s16, 1
      %p153 = por %p151, %p152
      %p154 = scmp.ne.s32.totalorder %s146, %s149
      %p155 = scmp.eq.s32.totalorder %s16, 0
      %p156 = por %p154, %p155
      %p157 = scmp.ne.s32.totalorder %s146, %s149
      %p158 = scmp.eq.s32.totalorder %s21, 1
      %p159 = por %p157, %p158
      %p160 = scmp.ne.s32.totalorder %s149, %s150
      %p161 = scmp.eq.s32.totalorder %s21, 0
      %p162 = por %p160, %p161
      %p163 = scmp.ne.s32.totalorder %s149, %s150
      %p164 = scmp.eq.s32.totalorder %s22, 1
      %p165 = por %p163, %p164
      %p167 = scmp.ne.s32.totalorder %s150, %s166
      %p168 = scmp.eq.s32.totalorder %s22, 0
      %p169 = por %p167, %p168
      %p170 = scmp.le.s32.totalorder 1, %s16
      %p171 = scmp.lt.s32.totalorder %s16, 3
      %p172 = pnand %p170, %p171
      %p173 = pneg %p172
      // Predicated region
      $region9: #{tpu_custom_call.1} parent=5 // pred_check
        _
      $region10: #{tpu_custom_call.1} parent=5 // pred_check_branch
        %175 = sbr.rel (%p172) target = $region12
      $region11: #{tpu_custom_call.1} parent=5 // pred_region
        %s176 = ssub.s32 %s16, 1
        // Predicated region
        $region13: #{tpu_custom_call.1} parent=11 // pred_check
          %p177 = pneg %p82
        $region14: #{tpu_custom_call.1} parent=11 // pred_check_branch
          %179 = sbr.rel (%p177) target = $region16
        $region15: #{tpu_custom_call.1} parent=11 // pred_region
          %p180 = scmp.lt.s32.totalorder %s25, 0
          %s181 = scalar_select %p180, %s25, 0
          %s182 = smul.addr %s181, 2
          %s183 = scalar_lea.vmem %s1, %s182
        $region16: #{tpu_custom_call.1} parent=11 // pred_fallthru
          _
        // Predicated region
        $region17: #{tpu_custom_call.1} parent=11 // pred_check
          %p184 = pneg %p108
        $region18: #{tpu_custom_call.1} parent=11 // pred_check_branch
          %186 = sbr.rel (%p184) target = $region20
        $region19: #{tpu_custom_call.1} parent=11 // pred_region
          %p187 = scmp.lt.s32.totalorder %s25, 0
          %s188 = scalar_select %p187, %s25, 0
          %s189 = smul.addr %s188, 2
          %s190 = scalar_lea.vmem %s2, %s189
        $region20: #{tpu_custom_call.1} parent=11 // pred_fallthru
          _
        // Predicated region
        $region21: #{tpu_custom_call.1} parent=11 // pred_check
          %p191 = pneg %p134
        $region22: #{tpu_custom_call.1} parent=11 // pred_check_branch
          %193 = sbr.rel (%p191) target = $region24
        $region23: #{tpu_custom_call.1} parent=11 // pred_region
          %p194 = scmp.lt.s32.totalorder %s25, 0
          %s195 = scalar_select %p194, %s25, 0
          %s196 = smul.addr %s195, 2
          %s197 = scalar_lea.vmem %s3, %s196
        $region24: #{tpu_custom_call.1} parent=11 // pred_fallthru
          _
      $region12: #{tpu_custom_call.1} parent=5 // pred_fallthru
        _
      %p198 = scmp.lt.s32.totalorder %s16, 2
      // Predicated region
      $region25: #{tpu_custom_call.1} parent=5 // pred_check
        %p199 = pneg %p198
      $region26: #{tpu_custom_call.1} parent=5 // pred_check_branch
        %201 = sbr.rel (%p199) target = $region28
      $region27: #{tpu_custom_call.1} parent=5 // pred_region
        // Predicated region
        $region29: #{tpu_custom_call.1} parent=27 // pred_check
          %p202 = pneg %p50
        $region30: #{tpu_custom_call.1} parent=27 // pred_check_branch
          %204 = sbr.rel (%p202) target = $region32
        $region31: #{tpu_custom_call.1} parent=27 // pred_region
          %s205 = sand.u32 %s40, 1
          %s206 = scalar_lea.sflag [#allocation3], %s205
          %s207 = sand.u32 %s40, 1
          %s208 = smul.addr %s207, 2
          %s209 = scalar_lea.vmem [#allocation2], %s208
          %s211 = ssub.s32 32, 32
          %212 = vsyncadd %s206, %s211
          %s213 = sadd.s32 %s23, %s24
          %s214 = smul.addr %s213, 32
          %s215 = scalar_lea.hbm %s0, %s214
          %s217 = sshll.u32 %s209, 4
          %s218 = int_to_ptr.vmem [resolvable:$true] %s217
          %220 = dma.hbm_to_vmem [thread:$0]  %s215, 32, %s218, %s206
        $region32: #{tpu_custom_call.1} parent=27 // pred_fallthru
          _
      $region28: #{tpu_custom_call.1} parent=5 // pred_fallthru
        _
      %p221 = scmp.le.s32.totalorder 1, %s16
      %p222 = scmp.lt.s32.totalorder %s16, 3
      %p223 = pnand %p221, %p222
      %p224 = pneg %p223
      // Predicated region
      $region33: #{tpu_custom_call.1} parent=5 // pred_check
        _
      $region34: #{tpu_custom_call.1} parent=5 // pred_check_branch
        %226 = sbr.rel (%p223) target = $region36
      $region35: #{tpu_custom_call.1} parent=5 // pred_region
        %s227 = ssub.s32 %s16, 1
        %s228 = sand.u32 %s43, 1
        %s229 = scalar_lea.sflag [#allocation3], %s228
        %s230 = sand.u32 %s43, 1
        %s231 = smul.addr %s230, 2
        %s232 = scalar_lea.vmem [#allocation2], %s231
        // Predicated region
        $region37: #{tpu_custom_call.1} parent=35 // pred_check
          %p233 = pneg %p56
        $region38: #{tpu_custom_call.1} parent=35 // pred_check_branch
          %235 = sbr.rel (%p233) target = $region40
        $region39: #{tpu_custom_call.1} parent=35 // pred_region
          %236 = dma.done %s229, 32
        $region40: #{tpu_custom_call.1} parent=35 // pred_fallthru
          _
        %s237 = sand.u32 %s43, 1
        %s238 = scalar_lea.sflag [#allocation3], %s237
        %s239 = sand.u32 %s43, 1
        %s240 = smul.addr %s239, 2
        %s241 = scalar_lea.vmem [#allocation2], %s240
        %p242 = pneg %p56
        %p243 = pneg %p53
        %p244 = scmp.lt.s32.totalorder %s25, 0
        %s245 = scalar_select %p244, %s25, 0
        %s246 = smul.addr %s245, 2
        %s247 = scalar_lea.vmem %s1, %s246
        %p248 = pneg %p82
        %p249 = pneg %p79
        %p250 = scmp.lt.s32.totalorder %s25, 0
        %s251 = scalar_select %p250, %s25, 0
        %s252 = smul.addr %s251, 2
        %s253 = scalar_lea.vmem %s2, %s252
        %p254 = pneg %p108
        %p255 = pneg %p105
        %p256 = scmp.lt.s32.totalorder %s25, 0
        %s257 = scalar_select %p256, %s25, 0
        %s258 = smul.addr %s257, 2
        %s259 = scalar_lea.vmem %s3, %s258
        %p260 = pneg %p134
        %p261 = pneg %p131
        %p262 = pneg %p162
        %p263 = pneg %p159
        %s264 = sand.u32 %s149, 1
        %s265 = scalar_lea.sflag [#allocation4], %s264
        %s266 = sand.u32 %s149, 1
        %s267 = smul.addr %s266, 2
        %s268 = scalar_lea.vmem [#allocation5], %s267
        %p269 = scmp.lt.s32.totalorder %s25, 0
        %s270 = scalar_select %p269, %s25, 0
        %s271 = smul.addr %s270, 2
        %s272 = scalar_lea.vmem %s1, %s271
        %p273 = scmp.lt.s32.totalorder %s25, 0
        %s274 = scalar_select %p273, %s25, 0
        %s275 = smul.addr %s274, 2
        %s276 = scalar_lea.vmem %s2, %s275
        %p277 = scmp.lt.s32.totalorder %s25, 0
        %s278 = scalar_select %p277, %s25, 0
        %s279 = smul.addr %s278, 2
        %s280 = scalar_lea.vmem %s3, %s279
        %v281 = vld [vmem:[%s232] sm:$0x3]
        %282 = vrot.lane.b32.xlu0 %v281, 1
        %v283 = vpop.permute.xlu0 %282
        %284 = vrot.lane.b32.xlu0 %v281, 127
        %v285 = vpop.permute.xlu0 %284
        %v286 = vld [vmem:[%s272] sm:$0x3]
        %v287 = vmul.f32 %v281, %v286
        %v288 = vld [vmem:[%s276] sm:$0x3]
        %v289 = vmul.f32 %v283, %v288
        %v290 = vadd.f32 %v287, %v289
        %v291 = vld [vmem:[%s280] sm:$0x3]
        %v292 = vmul.f32 %v285, %v291
        %v293 = vadd.f32 %v290, %v292
        %294 = vst [vmem:[%s268] sm:$0x3] %v293
        %s295 = sand.u32 %s149, 1
        %s296 = scalar_lea.sflag [#allocation4], %s295
        %s297 = sand.u32 %s149, 1
        %s298 = smul.addr %s297, 2
        %s299 = scalar_lea.vmem [#allocation5], %s298
        // Predicated region
        $region41: #{tpu_custom_call.1} parent=35 // pred_check
          %p300 = pneg %p159
        $region42: #{tpu_custom_call.1} parent=35 // pred_check_branch
          %302 = sbr.rel (%p300) target = $region44
        $region43: #{tpu_custom_call.1} parent=35 // pred_region
          %s304 = ssub.s32 32, 32
          %305 = vsyncadd %s296, %s304
          %s306 = sadd.s32 %s25, %s26
          %s307 = smul.addr %s306, 32
          %s308 = scalar_lea.hbm %s4, %s307
          %s310 = sshll.u32 %s299, 4
          %s311 = int_to_ptr.vmem [resolvable:$true] %s310
          %313 = dma.vmem_to_hbm [thread:$0]  %s311, 32, %s308, %s296
        $region44: #{tpu_custom_call.1} parent=35 // pred_fallthru
          _
      $region36: #{tpu_custom_call.1} parent=5 // pred_fallthru
        _
      %p314 = scmp.le.s32.totalorder 2, %s16
      // Predicated region
      $region45: #{tpu_custom_call.1} parent=5 // pred_check
        %p315 = pneg %p314
      $region46: #{tpu_custom_call.1} parent=5 // pred_check_branch
        %317 = sbr.rel (%p315) target = $region48
      $region47: #{tpu_custom_call.1} parent=5 // pred_region
        %s318 = ssub.s32 %s16, 2
        // Predicated region
        $region49: #{tpu_custom_call.1} parent=47 // pred_check
          %p319 = pneg %p165
        $region50: #{tpu_custom_call.1} parent=47 // pred_check_branch
          %321 = sbr.rel (%p319) target = $region52
        $region51: #{tpu_custom_call.1} parent=47 // pred_region
          %s322 = sand.u32 %s150, 1
          %s323 = scalar_lea.sflag [#allocation4], %s322
          %s324 = sand.u32 %s150, 1
          %s325 = smul.addr %s324, 2
          %s326 = scalar_lea.vmem [#allocation5], %s325
          %327 = dma.done %s323, 32
        $region52: #{tpu_custom_call.1} parent=47 // pred_fallthru
          _
      $region48: #{tpu_custom_call.1} parent=5 // pred_fallthru
        _
    $region6: #{tpu_custom_call.1} parent=1 // loop_footer
      %s20 = sadd.s32 1, %s16
    $region7: #{tpu_custom_call.1} parent=1 // loop_footer_branch
      %15 = sbr.rel target = $region3
    $region8: #{tpu_custom_call.1} parent=1 // loop_exit
      _
    %328 = vsyncpa [#allocation3], 1
    %s329 = scalar_lea.sflag [#allocation3], 1
    %330 = vsyncpa %s329, 1
    %331 = vsyncpa [#allocation4], 1
    %s332 = scalar_lea.sflag [#allocation4], 1
    %333 = vsyncpa %s332, 1

</llo_original>
